<compile_context>
chip_gen: v7x
topology: tpu7x:2x2x1
jax: 0.10.0
libtpu: 0.0.40
codegen_flags: <defaults>
</compile_context>

<pallas_src>
import jax
import jax.numpy as jnp
from jax.experimental import pallas as pl
from jax.experimental.pallas import tpu as pltpu


def _round_up(x: int, m: int) -> int:
    return ((x + m - 1) // m) * m


def _make_corr2d_kernel(kh: int, kw: int, tm: int, halo: int, w_pad: int):
    """Per-row-tile kernel.

    x_ref: (tm,   w_pad) main input row tile            (VMEM)
    h_ref: (halo, w_pad) next `halo` input rows (halo)  (VMEM)
    w_ref: (kh, kw)      weights                        (SMEM)
    b_ref: (1,)          bias                           (SMEM)
    o_ref: (tm,   w_pad) output row tile                (VMEM)
    """

    def kernel(x_ref, h_ref, w_ref, b_ref, o_ref):
        # Hoist every SMEM scalar read out of the unrolled MAC loop.
        w = [[w_ref[p, q] for q in range(kw)] for p in range(kh)]
        bias = b_ref[0]

        if kh > 1:
            # Extended tile: main rows + 8-row halo, so row shifts never need
            # data outside this block.  Both pieces are 8-row aligned.
            x_ext = jnp.concatenate([x_ref[...], h_ref[...]], axis=0)
            ext_rows = tm + halo
        else:
            x_ext = x_ref[...]
            ext_rows = tm

        acc = jnp.zeros((tm, w_pad), jnp.float32)
        for p in range(kh):                      # static, fully unrolled
            if p == 0:
                x_p = x_ext[:tm, :]
            else:
                # Sublane rotate on the XLU; equivalent to x_ext[p:p+tm, :].
                x_p = pltpu.roll(x_ext, shift=ext_rows - p, axis=0)[:tm, :]
            for q in range(kw):                  # static, fully unrolled
                if q == 0:
                    x_pq = x_p
                else:
                    # Lane rotate on the XLU; equivalent to a left shift by q.
                    # Wrapped lanes only land in padded output columns.
                    x_pq = pltpu.roll(x_p, shift=w_pad - q, axis=1)
                acc = acc + x_pq * w[p][q]

        o_ref[...] = acc + bias

    return kernel


def conv2d_forward(x: jax.Array, weight: jax.Array, bias: jax.Array,
                   *, block_rows: int = 256) -> jax.Array:
    """Equivalent of Conv2D.forward: corr2d(x, weight) + bias."""
    H, W = x.shape
    kh, kw = weight.shape
    assert kh - 1 <= 8, "row halo is a single 8-row slab (supports kh <= 9)"
    oh, ow = H - kh + 1, W - kw + 1

    # Lane/sublane-aligned padded geometry.
    w_pad = _round_up(W, 128)                              # lanes (in & out)
    tm = min(_round_up(block_rows, 8), _round_up(oh, 8))   # row-tile height
    oh_pad = _round_up(oh, tm)                             # padded out rows
    halo = 8
    h_in_pad = oh_pad + halo                               # >= H since kh<=9

    x_pad = jnp.zeros((h_in_pad, w_pad), jnp.float32)
    x_pad = x_pad.at[:H, :W].set(x.astype(jnp.float32))

    n_row_tiles = oh_pad // tm
    tm_sub = tm // 8   # main-tile height in 8-row blocks (halo index map)

    kernel = _make_corr2d_kernel(kh, kw, tm, halo, w_pad)

    y_pad = pl.pallas_call(
        kernel,
        out_shape=jax.ShapeDtypeStruct((oh_pad, w_pad), jnp.float32),
        grid=(n_row_tiles,),
        in_specs=[
            # Main input row tile: rows [i*tm, (i+1)*tm).
            pl.BlockSpec((tm, w_pad), lambda i: (i, 0)),
            # Row halo: the 8 rows just below the tile, [(i+1)*tm, (i+1)*tm+8).
            pl.BlockSpec((halo, w_pad), lambda i: ((i + 1) * tm_sub, 0)),
            pl.BlockSpec(memory_space=pltpu.SMEM),   # weights (tiny scalars)
            pl.BlockSpec(memory_space=pltpu.SMEM),   # bias (scalar)
        ],
        out_specs=pl.BlockSpec((tm, w_pad), lambda i: (i, 0)),
        compiler_params=pltpu.CompilerParams(
            dimension_semantics=("parallel",),
            vmem_limit_bytes=32 * 1024 * 1024,
        ),
    )(x_pad, x_pad, weight.astype(jnp.float32), bias.astype(jnp.float32))

    # Slice the valid (lane-dense-padded) region.
    return y_pad[:oh, :ow]


def _reference_corr2d(x, w, b):
    H, W = x.shape
    kh, kw = w.shape
    oh, ow = H - kh + 1, W - kw + 1
    out = jnp.zeros((oh, ow), jnp.float32)
    for p in range(kh):
        for q in range(kw):
            out = out + x[p:p + oh, q:q + ow] * w[p, q]
    return out + b[0]


if __name__ == "__main__":
    key = jax.random.PRNGKey(0)
    k_x, k_w, k_x2, k_w2 = jax.random.split(key, 4)

    # Shapes from the original script: X is 6x8, kernel_size=(1, 2).
    x = jax.random.normal(k_x, (6, 8), dtype=jnp.float32)
    weight = jax.random.uniform(k_w, (1, 2), dtype=jnp.float32)  # torch.rand
    bias = jnp.zeros((1,), dtype=jnp.float32)                    # torch.zeros(1)

    y = jax.block_until_ready(conv2d_forward(x, weight, bias))
    y_ref = _reference_corr2d(x, weight, bias)
    assert y.shape == (6, 7)
    assert jnp.allclose(y, y_ref, atol=1e-5, rtol=1e-5)

    # Exercise the general tiled path: 3x3 window, multiple row tiles + halo.
    x2 = jax.random.normal(k_x2, (18, 33), dtype=jnp.float32)
    w2 = jax.random.uniform(k_w2, (3, 3), dtype=jnp.float32)
    y2 = jax.block_until_ready(conv2d_forward(x2, w2, bias, block_rows=8))
    y2_ref = _reference_corr2d(x2, w2, bias)
    assert y2.shape == (16, 31)
    assert jnp.allclose(y2, y2_ref, atol=1e-4, rtol=1e-4)

    print("KERNEL_OK")
</pallas_src>

<mosaic_0001>
module attributes {stable_mosaic.version = 11 : i64} {
  func.func @kernel(%arg0: i32, %arg1: memref<8x128xf32, #tpu.memory_space<vmem>>, %arg2: memref<8x128xf32, #tpu.memory_space<vmem>>, %arg3: memref<1x2xf32, #tpu.memory_space<smem>>, %arg4: memref<1xf32, #tpu.memory_space<smem>>, %arg5: memref<8x128xf32, #tpu.memory_space<vmem>>) attributes {dimension_semantics = [#tpu.dimension_semantics<parallel>], iteration_bounds = array<i64: 1>, scalar_prefetch = 0 : i64, scratch_operands = 0 : i64, tpu.core_type = #tpu.core_type<tc>, window_params = [{transform_indices = @transform_0, window_bounds = array<i64: 8, 128>}, {transform_indices = @transform_1, window_bounds = array<i64: 8, 128>}, {transform_indices = @transform_2, window_bounds = array<i64: 1, 2>}, {transform_indices = @transform_3, window_bounds = array<i64: 1>}, {transform_indices = @transform_4, window_bounds = array<i64: 8, 128>}]} {
    %c0 = arith.constant 0 : index
    %c0_0 = arith.constant 0 : index
    %0 = memref.load %arg3[%c0, %c0_0] : memref<1x2xf32, #tpu.memory_space<smem>>
    %c0_1 = arith.constant 0 : index
    %c1 = arith.constant 1 : index
    %1 = memref.load %arg3[%c0_1, %c1] : memref<1x2xf32, #tpu.memory_space<smem>>
    %c0_2 = arith.constant 0 : index
    %2 = memref.load %arg4[%c0_2] : memref<1xf32, #tpu.memory_space<smem>>
    %c0_3 = arith.constant 0 : index
    %c0_4 = arith.constant 0 : index
    %3 = vector.load %arg1[%c0_3, %c0_4] : memref<8x128xf32, #tpu.memory_space<vmem>>, vector<8x128xf32>
    %cst = arith.constant 0.000000e+00 : f32
    %4 = vector.broadcast %cst : f32 to vector<8x128xf32>
    %5 = vector.broadcast %0 : f32 to vector<8x128xf32>
    %6 = arith.mulf %3, %5 : vector<8x128xf32>
    %7 = arith.addf %4, %6 : vector<8x128xf32>
    %c127_i32 = arith.constant 127 : i32
    %8 = tpu.dynamic_rotate %3 by %c127_i32 dim 1 : vector<8x128xf32>, i32 -> vector<8x128xf32>
    %9 = vector.broadcast %1 : f32 to vector<8x128xf32>
    %10 = arith.mulf %8, %9 : vector<8x128xf32>
    %11 = arith.addf %7, %10 : vector<8x128xf32>
    %12 = vector.broadcast %2 : f32 to vector<8x128xf32>
    %13 = arith.addf %11, %12 : vector<8x128xf32>
    %c0_5 = arith.constant 0 : index
    %c0_6 = arith.constant 0 : index
    %14 = vector.load %arg5[%c0_5, %c0_6] : memref<8x128xf32, #tpu.memory_space<vmem>>, vector<8x128xf32>
    tpu.vector_store %arg5[%c0_5, %c0_6], %13 {strides = array<i32>} : memref<8x128xf32, #tpu.memory_space<vmem>>, vector<8x128xf32>,
    return
  }
  func.func @transform_0(%arg0: i32) -> (i32, i32) {
    %c0_i32 = arith.constant 0 : i32
    %c0_i32_0 = arith.constant 0 : i32
    return %arg0, %c0_i32 : i32, i32
  }
  func.func @transform_1(%arg0: i32) -> (i32, i32) {
    %c1_i32 = arith.constant 1 : i32
    %0 = arith.addi %arg0, %c1_i32 : i32
    %c1_i32_0 = arith.constant 1 : i32
    %1 = arith.muli %0, %c1_i32_0 : i32
    %c0_i32 = arith.constant 0 : i32
    %c0_i32_1 = arith.constant 0 : i32
    return %1, %c0_i32 : i32, i32
  }
  func.func @transform_2(%arg0: i32) -> (i32, i32) {
    %c0_i32 = arith.constant 0 : i32
    %c0_i32_0 = arith.constant 0 : i32
    %c0_i32_1 = arith.constant 0 : i32
    return %c0_i32, %c0_i32_0 : i32, i32
  }
  func.func @transform_3(%arg0: i32) -> i32 {
    %c0_i32 = arith.constant 0 : i32
    %c0_i32_0 = arith.constant 0 : i32
    return %c0_i32 : i32
  }
  func.func @transform_4(%arg0: i32) -> (i32, i32) {
    %c0_i32 = arith.constant 0 : i32
    %c0_i32_0 = arith.constant 0 : i32
    return %arg0, %c0_i32 : i32, i32
  }
}

</mosaic_0001>

<llo_original>
// kernel: tpu_custom_call.1
$region0: #{tpu_custom_call.1}
  #allocation0 [shape = 'u32[]', space=smem, size = 0x4, offset = 0x4, fixed_abs, tag = 'smem constant byte address 0x4 - core index']
  #allocation1 [shape = 'u32[144,128]{1,0:T(1,128)}', space=vmem, size = 0x12000, scoped, tag = 'internal scratch']
  #allocation2 [shape = 'f32[1]{0:T(128)S(6)}', space=smem, size = 0x200, scoped, tag = 'scoped memory for tpu_custom_call.1']
  %s0 = inlined_call_operand.hbm [shape: f32[16,128], index: 0, kind: input, shape index: {}]
  %s1 = inlined_call_operand.hbm [shape: f32[16,128], index: 1, kind: input, shape index: {}]
  %s2 = inlined_call_operand.vmem [shape: f32[1,2], index: 2, kind: input, shape index: {}]
  %s3 = inlined_call_operand.<no memory space> [shape: f32[1], index: 3, kind: input, shape index: {}]
  %s4 = inlined_call_operand.hbm [shape: f32[8,128], index: 4, kind: output, shape index: {}]
  %s5 = sld [smem:[#allocation0]]
  $region38: #{tpu_custom_call.1} parent=0
    _
  %s7 = ssub.s32 1, %s5
  %s8 = scalar_select 0, %s7, %s5
  %9 = sst [smem:[#allocation2]] %s3
  $region1: #{tpu_custom_call.1} parent=0
    #allocation3 [shape = 'u8[4096]{0}', space=vmem, size = 0x1000, scoped, tag = 'input window, operand 0, single buffered']
    #allocation4 [shape = 's32[1]{0}', space=sflag, size = 0x4, scoped, tag = 'scoped memory for tpu_custom_call.1']
    #allocation5 [shape = 's32[1]{0}', space=sflag, size = 0x4, scoped, tag = 'scoped memory for tpu_custom_call.1']
    #allocation6 [shape = 's32[1]{0}', space=sflag, size = 0x4, scoped, tag = 'scoped memory for tpu_custom_call.1']
    #allocation7 [shape = 'u8[4096]{0}', space=vmem, size = 0x1000, scoped, tag = 'input window, operand 1, single buffered']
    #allocation8 [shape = 's32[1]{0}', space=sflag, size = 0x4, scoped, tag = 'scoped memory for tpu_custom_call.1']
    #allocation9 [shape = 'u8[512]{0}', space=smem, size = 0x200, scoped, tag = 'input window, operand 2, single buffered']
    #allocation10 [shape = 'u8[4096]{0}', space=vmem, size = 0x1000, scoped, tag = 'output window, operand 0, single buffered']
    %10 = vsyncpa [#allocation4], 0
    %11 = vsyncpa [#allocation8], 0
    %12 = vsyncpa [#allocation6], 0
    %13 = vsyncpa [#allocation5], 0
    // Predicated region
    $region2: #{tpu_custom_call.1} parent=1 // pred_check
      _
    $region3: #{tpu_custom_call.1} parent=1 // pred_check_branch
      %15 = sbr.rel (0) target = $region5
    $region4: #{tpu_custom_call.1} parent=1 // pred_region
      %s17 = ssub.s32 128, 128
      %18 = vsyncadd [#allocation4], %s17
      %s20 = sshll.u32 [#allocation3], 4
      %s21 = int_to_ptr.vmem [resolvable:$true] %s20
      %23 = dma.hbm_to_vmem [thread:$0]  %s0, 128, %s21, [#allocation4]
    $region5: #{tpu_custom_call.1} parent=1 // pred_fallthru
      _
    // Predicated region
    $region6: #{tpu_custom_call.1} parent=1 // pred_check
      _
    $region7: #{tpu_custom_call.1} parent=1 // pred_check_branch
      %25 = sbr.rel (0) target = $region9
    $region8: #{tpu_custom_call.1} parent=1 // pred_region
      %s26 = sadd.s32 0, 1
      %s28 = ssub.s32 128, 128
      %29 = vsyncadd [#allocation8], %s28
      %s30 = smul.addr %s26, 128
      %s31 = scalar_lea.hbm %s1, %s30
      %s33 = sshll.u32 [#allocation7], 4
      %s34 = int_to_ptr.vmem [resolvable:$true] %s33
      %36 = dma.hbm_to_vmem [thread:$0]  %s31, 128, %s34, [#allocation8]
    $region9: #{tpu_custom_call.1} parent=1 // pred_fallthru
      _
    // Predicated region
    $region10: #{tpu_custom_call.1} parent=1 // pred_check
      _
    $region11: #{tpu_custom_call.1} parent=1 // pred_check_branch
      %38 = sbr.rel (0) target = $region13
    $region12: #{tpu_custom_call.1} parent=1 // pred_region
      %s40 = ssub.s32 16, 16
      %41 = vsyncadd [#allocation6], %s40
      %s43 = sshll.u32 %s2, 4
      %s44 = int_to_ptr.vmem [resolvable:$true] %s43
      %46 = dma.vmem_to_smem %s44, 16, [#allocation9], [#allocation6]
    $region13: #{tpu_custom_call.1} parent=1 // pred_fallthru
      _
    // Predicated region
    $region14: #{tpu_custom_call.1} parent=1 // pred_check
      _
    $region15: #{tpu_custom_call.1} parent=1 // pred_check_branch
      %48 = sbr.rel (0) target = $region17
    $region16: #{tpu_custom_call.1} parent=1 // pred_region
      _
    $region17: #{tpu_custom_call.1} parent=1 // pred_fallthru
      _
    // Predicated region
    $region18: #{tpu_custom_call.1} parent=1 // pred_check
      _
    $region19: #{tpu_custom_call.1} parent=1 // pred_check_branch
      %50 = sbr.rel (0) target = $region21
    $region20: #{tpu_custom_call.1} parent=1 // pred_region
      %51 = dma.done [#allocation4], 128
    $region21: #{tpu_custom_call.1} parent=1 // pred_fallthru
      _
    // Predicated region
    $region22: #{tpu_custom_call.1} parent=1 // pred_check
      _
    $region23: #{tpu_custom_call.1} parent=1 // pred_check_branch
      %53 = sbr.rel (0) target = $region25
    $region24: #{tpu_custom_call.1} parent=1 // pred_region
      %54 = dma.done [#allocation8], 128
    $region25: #{tpu_custom_call.1} parent=1 // pred_fallthru
      _
    // Predicated region
    $region26: #{tpu_custom_call.1} parent=1 // pred_check
      _
    $region27: #{tpu_custom_call.1} parent=1 // pred_check_branch
      %56 = sbr.rel (0) target = $region29
    $region28: #{tpu_custom_call.1} parent=1 // pred_region
      %57 = dma.done [#allocation6], 16
    $region29: #{tpu_custom_call.1} parent=1 // pred_fallthru
      _
    %58 = sfence
    %s59 = sadd.s32 0, 1
    %s60 = sld [smem:[#allocation9]]
    %s61 = sld [smem:[#allocation9 + $0x1]]
    %s62 = sld [smem:[#allocation2]]
    %v63 = vld [vmem:[#allocation3] sm:$0xff]
    %v64 = vstv %s60
    %v65 = vmul.f32 %v63, %v64
    %v66 = vadd.f32 %v65, 0.0
    %67 = vrot.lane.b32.xlu0 %v63, 127
    %v68 = vpop.permute.xlu0 %67
    %v69 = vstv %s61
    %v70 = vmul.f32 %v68, %v69
    %v71 = vadd.f32 %v66, %v70
    %v72 = vstv %s62
    %v73 = vadd.f32 %v71, %v72
    %74 = vst [vmem:[#allocation10] sm:$0xff] %v73
    // Predicated region
    $region30: #{tpu_custom_call.1} parent=1 // pred_check
      _
    $region31: #{tpu_custom_call.1} parent=1 // pred_check_branch
      %76 = sbr.rel (0) target = $region33
    $region32: #{tpu_custom_call.1} parent=1 // pred_region
      %s78 = ssub.s32 128, 128
      %79 = vsyncadd [#allocation5], %s78
      %s81 = sshll.u32 [#allocation10], 4
      %s82 = int_to_ptr.vmem [resolvable:$true] %s81
      %84 = dma.vmem_to_hbm [thread:$0]  %s82, 128, %s4, [#allocation5]
    $region33: #{tpu_custom_call.1} parent=1 // pred_fallthru
      _
    // Predicated region
    $region34: #{tpu_custom_call.1} parent=1 // pred_check
      _
    $region35: #{tpu_custom_call.1} parent=1 // pred_check_branch
      %86 = sbr.rel (0) target = $region37
    $region36: #{tpu_custom_call.1} parent=1 // pred_region
      %87 = dma.done [#allocation5], 128
    $region37: #{tpu_custom_call.1} parent=1 // pred_fallthru
      _
    %88 = vsyncpa [#allocation4], 1
    %89 = vsyncpa [#allocation8], 1
    %90 = vsyncpa [#allocation5], 1
    %91 = vsyncpa [#allocation6], 1

</llo_original>
